<compile_context>
chip_gen: v7x
topology: tpu7x:2x2x1
jax: 0.10.0
libtpu: 0.0.40
codegen_flags: <defaults>
</compile_context>

<pallas_src>
import math
from functools import partial

import jax
import jax.numpy as jnp
from jax.experimental import pallas as pl
from jax.experimental.pallas import tpu as pltpu

LOG_2PI = math.log(2.0 * math.pi)


def actor_critic_kernel(
    state_ref, action_ref, w1_ref, w2_ref, w3_ref, consts_ref,
    logp_ref, value_ref,
    *, action_dim, compute_dtype, activation_dtype,
):
    A = action_dim
    # Packed small constants (single resident (8,128) tile; rows laid out in fuse_params).
    b1 = consts_ref[0:1, :]            # (1, 128)
    b2 = consts_ref[1:2, :64]          # (1, 64)
    b3 = consts_ref[2:3, :A + 1]       # (1, A+1)
    inv_var = consts_ref[3:4, :A]      # (1, A)
    logp_c = consts_ref[4:5, 0:1]      # (1, 1)

    # ---- fused actor+critic MLP: 3 lane-dense matmuls, f32 accumulation ----
    x = state_ref[...].astype(compute_dtype)                                 # (TB, S)
    h = jnp.dot(x, w1_ref[...], preferred_element_type=jnp.float32) + b1     # (TB, 128)
    h = jnp.tanh(h.astype(activation_dtype))
    h = jnp.dot(h.astype(compute_dtype), w2_ref[...],
                preferred_element_type=jnp.float32) + b2                     # (TB, 64)
    h = jnp.tanh(h.astype(activation_dtype))
    z = jnp.dot(h.astype(compute_dtype), w3_ref[...],
                preferred_element_type=jnp.float32) + b3                     # (TB, A+1)

    action_mean = jnp.tanh(z[:, :A])            # actor head (kept f32 -> feeds logp)
    value = z[:, A:A + 1]                       # critic head (linear), (TB, 1)

    # ---- diag-Gaussian log-prob (constants pre-folded; f32 math) ----
    diff = action_ref[...].astype(jnp.float32) - action_mean                # (TB, A)
    maha = jnp.sum(diff * diff * inv_var, axis=-1, keepdims=True)           # (TB, 1)

    # Narrow outputs: 8 bytes/row written in total (vs 512 B/row previously).
    logp_ref[...] = logp_c - 0.5 * maha
    value_ref[...] = value


def fuse_params(params, compute_dtype=jnp.float32):
    """Fuse actor/critic weights; pack all small constants into one (8,128) tile."""
    A = params["w3a"].shape[1]
    assert A + 1 <= 128, "action_dim must fit in one 128-lane constant row"

    w1 = jnp.concatenate([params["w1a"], params["w1c"]], axis=1)             # (S, 128)
    w2 = jnp.zeros((128, 64), jnp.float32)
    w2 = w2.at[:64, :32].set(params["w2a"]).at[64:, 32:].set(params["w2c"])  # block-diag
    w3 = jnp.zeros((64, A + 1), jnp.float32)
    w3 = w3.at[:32, :A].set(params["w3a"]).at[32:, A:].set(params["w3c"])    # block-diag

    b1 = jnp.concatenate([params["b1a"], params["b1c"]], axis=1)[0]          # (128,)
    b2 = jnp.concatenate([params["b2a"], params["b2c"]], axis=1)[0]          # (64,)
    b3 = jnp.concatenate([params["b3a"], params["b3c"]], axis=1)[0]          # (A+1,)

    var = params["action_var"][0]                                            # (A,)
    sum_logvar = jnp.sum(jnp.log(var))
    logp_const = -0.5 * sum_logvar - 0.5 * A * LOG_2PI                       # scalar
    entropy_const = 0.5 * A * (1.0 + LOG_2PI) + 0.5 * sum_logvar             # scalar

    consts = jnp.zeros((8, 128), jnp.float32)
    consts = consts.at[0, :].set(b1)
    consts = consts.at[1, :64].set(b2)
    consts = consts.at[2, :A + 1].set(b3)
    consts = consts.at[3, :A].set(1.0 / var)
    consts = consts.at[4, 0].set(logp_const)

    return dict(
        w1=w1.astype(compute_dtype),
        w2=w2.astype(compute_dtype),
        w3=w3.astype(compute_dtype),
        consts=consts,
        entropy_const=entropy_const.astype(jnp.float32),
    )


def _round_up(x, m):
    return ((x + m - 1) // m) * m


def _pick_batch_tile(B, block_b):
    """Large batch tiles (amortize ~0.35us/step), but >=2 grid steps for v7x megacore."""
    tb = B if B <= block_b else block_b
    if B >= 256:
        # Ensure the "parallel" batch axis has at least 2 steps so both v7x
        # TensorCores get work; no-op on v5e/v6e (single TC).
        tb = min(tb, _round_up(pl.cdiv(B, 2), 128))
    if tb < B:
        tb = max(8, (tb // 8) * 8)   # sublane-aligned when actually tiling
    return tb


def actor_critic_evaluate(state, action, params, *, block_b=2048,
                          compute_dtype=jnp.float32,
                          activation_dtype=jnp.float32):
    """Pallas-backed equivalent of ActorCritic.evaluate(state, action).

    Returns (action_logprobs (B,), state_value (B,), dist_entropy (B,)).

    dtype guidance:
      * compute_dtype: MXU input dtype. bfloat16 is fine on v5e/v6e/v7x
        (f32 accumulation is always kept).
      * activation_dtype: dtype of the tanh activations. Use bfloat16 only on
        v6e/v7x (their VPU/EUP have bf16 paths); keep float32 on v5e.
      * Gaussian log-prob math is always f32.
      * If the producer already emits bf16 `state`, pass it directly (no wrapper
        cast); the kernel casts on the VMEM tile only if dtypes differ.
    """
    B, S = state.shape
    A = action.shape[-1]
    fused = fuse_params(params, compute_dtype)

    TB = _pick_batch_tile(B, block_b)
    grid = (pl.cdiv(B, TB),)

    kernel = partial(actor_critic_kernel, action_dim=A,
                     compute_dtype=compute_dtype, activation_dtype=activation_dtype)

    row_spec = lambda d: pl.BlockSpec((TB, d), lambda i: (i, 0))
    resident = lambda arr: pl.BlockSpec(arr.shape, lambda i: (0, 0))

    logp2d, value2d = pl.pallas_call(
        kernel,
        out_shape=(jax.ShapeDtypeStruct((B, 1), jnp.float32),
                   jax.ShapeDtypeStruct((B, 1), jnp.float32)),
        grid=grid,
        in_specs=[
            row_spec(S), row_spec(A),
            resident(fused["w1"]), resident(fused["w2"]), resident(fused["w3"]),
            resident(fused["consts"]),
        ],
        out_specs=(pl.BlockSpec((TB, 1), lambda i: (i, 0)),
                   pl.BlockSpec((TB, 1), lambda i: (i, 0))),
        compiler_params=pltpu.CompilerParams(
            dimension_semantics=("parallel",),      # megacore-shardable on v7x
            vmem_limit_bytes=32 * 1024 * 1024,
        ),
    )(state, action, fused["w1"], fused["w2"], fused["w3"], fused["consts"])

    logp = logp2d[:, 0]
    value = value2d[:, 0]
    ent = jnp.broadcast_to(fused["entropy_const"], (B,))   # batch-independent constant
    return logp, value, ent


def init_params(key, state_dim, action_dim, action_std):
    """Deterministic init matching the shapes of the PyTorch module's Linear layers."""
    def linear(k, fan_in, fan_out):
        kw, kb = jax.random.split(k)
        bound = 1.0 / math.sqrt(fan_in)  # PyTorch default Linear init range
        w = jax.random.uniform(kw, (fan_in, fan_out), jnp.float32, -bound, bound)
        b = jax.random.uniform(kb, (1, fan_out), jnp.float32, -bound, bound)
        return w, b

    keys = jax.random.split(key, 6)
    w1a, b1a = linear(keys[0], state_dim, 64)
    w2a, b2a = linear(keys[1], 64, 32)
    w3a, b3a = linear(keys[2], 32, action_dim)
    w1c, b1c = linear(keys[3], state_dim, 64)
    w2c, b2c = linear(keys[4], 64, 32)
    w3c, b3c = linear(keys[5], 32, 1)

    return dict(
        w1a=w1a, b1a=b1a, w2a=w2a, b2a=b2a, w3a=w3a, b3a=b3a,
        w1c=w1c, b1c=b1c, w2c=w2c, b2c=b2c, w3c=w3c, b3c=b3c,
        action_var=jnp.full((1, action_dim), action_std * action_std, jnp.float32),
    )


def reference_evaluate(state, action, params):
    """Pure-JAX (unfused) reference for verification."""
    h = jnp.tanh(state @ params["w1a"] + params["b1a"])
    h = jnp.tanh(h @ params["w2a"] + params["b2a"])
    mean = jnp.tanh(h @ params["w3a"] + params["b3a"])
    hc = jnp.tanh(state @ params["w1c"] + params["b1c"])
    hc = jnp.tanh(hc @ params["w2c"] + params["b2c"])
    value = (hc @ params["w3c"] + params["b3c"])[:, 0]
    var = params["action_var"]
    adim = action.shape[-1]
    diff = action - mean
    logp = (-0.5 * jnp.sum(diff * diff / var, axis=-1)
            - 0.5 * jnp.sum(jnp.log(var))
            - 0.5 * adim * LOG_2PI)
    ent = jnp.full((state.shape[0],),
                   0.5 * adim * (1.0 + LOG_2PI) + 0.5 * jnp.sum(jnp.log(var)),
                   jnp.float32)
    return logp, value, ent


if __name__ == "__main__":
    # TODO(synk): ActorCritic.act() (distribution sampling + memory list appends) is
    # host-side RNG/bookkeeping and is not part of the kernel; evaluate() is implemented.
    B, STATE_DIM, ACTION_DIM = 8, 16, 4
    ACTION_STD = 0.5

    key = jax.random.PRNGKey(0)
    k_params, k_state, k_action = jax.random.split(key, 3)

    params = init_params(k_params, STATE_DIM, ACTION_DIM, ACTION_STD)
    state = jax.random.normal(k_state, (B, STATE_DIM), jnp.float32)
    action = jax.random.normal(k_action, (B, ACTION_DIM), jnp.float32)

    logp, value, ent = actor_critic_evaluate(state, action, params)
    jax.block_until_ready((logp, value, ent))

    # correctness check against pure-JAX reference (f32 path -> tight tolerance)
    ref_logp, ref_value, ref_ent = reference_evaluate(state, action, params)
    assert jnp.allclose(logp, ref_logp, atol=1e-4), (logp, ref_logp)
    assert jnp.allclose(value, ref_value, atol=1e-4), (value, ref_value)
    assert jnp.allclose(ent, ref_ent, atol=1e-4), (ent, ref_ent)

    print("KERNEL_OK")
</pallas_src>

<mosaic_0001>
module attributes {stable_mosaic.version = 11 : i64} {
  func.func @actor_critic_kernel(%arg0: i32, %arg1: memref<8x16xf32, #tpu.memory_space<vmem>>, %arg2: memref<8x4xf32, #tpu.memory_space<vmem>>, %arg3: memref<16x128xf32, #tpu.memory_space<vmem>>, %arg4: memref<128x64xf32, #tpu.memory_space<vmem>>, %arg5: memref<64x5xf32, #tpu.memory_space<vmem>>, %arg6: memref<8x128xf32, #tpu.memory_space<vmem>>, %arg7: memref<8x1xf32, #tpu.memory_space<vmem>>, %arg8: memref<8x1xf32, #tpu.memory_space<vmem>>) attributes {dimension_semantics = [#tpu.dimension_semantics<parallel>], iteration_bounds = array<i64: 1>, scalar_prefetch = 0 : i64, scratch_operands = 0 : i64, tpu.core_type = #tpu.core_type<tc>, window_params = [{transform_indices = @transform_0, window_bounds = array<i64: 8, 16>}, {transform_indices = @transform_1, window_bounds = array<i64: 8, 4>}, {pipeline_mode = #tpu.pipeline_mode<synchronous>, transform_indices = @transform_2, window_bounds = array<i64: 16, 128>}, {pipeline_mode = #tpu.pipeline_mode<synchronous>, transform_indices = @transform_3, window_bounds = array<i64: 128, 64>}, {pipeline_mode = #tpu.pipeline_mode<synchronous>, transform_indices = @transform_4, window_bounds = array<i64: 64, 5>}, {pipeline_mode = #tpu.pipeline_mode<synchronous>, transform_indices = @transform_5, window_bounds = array<i64: 8, 128>}, {transform_indices = @transform_6, window_bounds = array<i64: 8, 1>}, {transform_indices = @transform_7, window_bounds = array<i64: 8, 1>}]} {
    %c0 = arith.constant 0 : index
    %c0_0 = arith.constant 0 : index
    %0 = vector.load %arg6[%c0, %c0_0] : memref<8x128xf32, #tpu.memory_space<vmem>>, vector<1x128xf32>
    %c1 = arith.constant 1 : index
    %c0_1 = arith.constant 0 : index
    %1 = vector.load %arg6[%c1, %c0_1] : memref<8x128xf32, #tpu.memory_space<vmem>>, vector<1x64xf32>
    %c2 = arith.constant 2 : index
    %c0_2 = arith.constant 0 : index
    %2 = vector.load %arg6[%c2, %c0_2] : memref<8x128xf32, #tpu.memory_space<vmem>>, vector<1x5xf32>
    %c3 = arith.constant 3 : index
    %c0_3 = arith.constant 0 : index
    %3 = vector.load %arg6[%c3, %c0_3] : memref<8x128xf32, #tpu.memory_space<vmem>>, vector<1x4xf32>
    %c4 = arith.constant 4 : index
    %c0_4 = arith.constant 0 : index
    %4 = vector.load %arg6[%c4, %c0_4] : memref<8x128xf32, #tpu.memory_space<vmem>>, vector<1x1xf32>
    %c0_5 = arith.constant 0 : index
    %c0_6 = arith.constant 0 : index
    %5 = vector.load %arg1[%c0_5, %c0_6] : memref<8x16xf32, #tpu.memory_space<vmem>>, vector<8x16xf32>
    %c0_7 = arith.constant 0 : index
    %c0_8 = arith.constant 0 : index
    %6 = vector.load %arg3[%c0_7, %c0_8] : memref<16x128xf32, #tpu.memory_space<vmem>>, vector<16x128xf32>
    %cst = arith.constant dense<0.000000e+00> : vector<8x128xf32>
    %7 = tpu.matmul %5, %6, %cst {dimension_numbers = #tpu.dot_dimension_numbers<[1], [0], [0], [1], [0, 0, 1, 1], [], []>} : vector<8x16xf32>, vector<16x128xf32>, vector<8x128xf32> -> vector<8x128xf32>
    %8 = vector.broadcast %0 : vector<1x128xf32> to vector<8x128xf32>
    %9 = arith.addf %7, %8 : vector<8x128xf32>
    %10 = math.tanh %9 : vector<8x128xf32>
    %c0_9 = arith.constant 0 : index
    %c0_10 = arith.constant 0 : index
    %11 = vector.load %arg4[%c0_9, %c0_10] : memref<128x64xf32, #tpu.memory_space<vmem>>, vector<128x64xf32>
    %cst_11 = arith.constant dense<0.000000e+00> : vector<8x64xf32>
    %12 = tpu.matmul %10, %11, %cst_11 {dimension_numbers = #tpu.dot_dimension_numbers<[1], [0], [0], [1], [0, 0, 1, 1], [], []>} : vector<8x128xf32>, vector<128x64xf32>, vector<8x64xf32> -> vector<8x64xf32>
    %13 = vector.broadcast %1 : vector<1x64xf32> to vector<8x64xf32>
    %14 = arith.addf %12, %13 : vector<8x64xf32>
    %15 = math.tanh %14 : vector<8x64xf32>
    %c0_12 = arith.constant 0 : index
    %c0_13 = arith.constant 0 : index
    %16 = vector.load %arg5[%c0_12, %c0_13] : memref<64x5xf32, #tpu.memory_space<vmem>>, vector<64x5xf32>
    %cst_14 = arith.constant dense<0.000000e+00> : vector<8x5xf32>
    %17 = tpu.matmul %15, %16, %cst_14 {dimension_numbers = #tpu.dot_dimension_numbers<[1], [0], [0], [1], [0, 0, 1, 1], [], []>} : vector<8x64xf32>, vector<64x5xf32>, vector<8x5xf32> -> vector<8x5xf32>
    %18 = vector.broadcast %2 : vector<1x5xf32> to vector<8x5xf32>
    %19 = arith.addf %17, %18 : vector<8x5xf32>
    %20 = vector.extract_strided_slice %19 {offsets = [0, 0], sizes = [8, 4], strides = [1, 1]} : vector<8x5xf32> to vector<8x4xf32>
    %21 = math.tanh %20 : vector<8x4xf32>
    %22 = vector.extract_strided_slice %19 {offsets = [0, 4], sizes = [8, 1], strides = [1, 1]} : vector<8x5xf32> to vector<8x1xf32>
    %c0_15 = arith.constant 0 : index
    %c0_16 = arith.constant 0 : index
    %23 = vector.load %arg2[%c0_15, %c0_16] : memref<8x4xf32, #tpu.memory_space<vmem>>, vector<8x4xf32>
    %24 = arith.subf %23, %21 : vector<8x4xf32>
    %25 = arith.mulf %24, %24 : vector<8x4xf32>
    %26 = vector.broadcast %3 : vector<1x4xf32> to vector<8x4xf32>
    %27 = arith.mulf %25, %26 : vector<8x4xf32>
    %cst_17 = arith.constant dense<0.000000e+00> : vector<8xf32>
    %28 = vector.multi_reduction <add>, %27, %cst_17 [1] : vector<8x4xf32> to vector<8xf32>
    %29 = vector.shape_cast %28 : vector<8xf32> to vector<8x1xf32>
    %cst_18 = arith.constant 5.000000e-01 : f32
    %30 = vector.broadcast %cst_18 : f32 to vector<8x1xf32>
    %31 = arith.mulf %30, %29 : vector<8x1xf32>
    %32 = vector.broadcast %4 : vector<1x1xf32> to vector<8x1xf32>
    %33 = arith.subf %32, %31 : vector<8x1xf32>
    %c0_19 = arith.constant 0 : index
    %c0_20 = arith.constant 0 : index
    %34 = vector.load %arg7[%c0_19, %c0_20] : memref<8x1xf32, #tpu.memory_space<vmem>>, vector<8x1xf32>
    tpu.vector_store %arg7[%c0_19, %c0_20], %33 {strides = array<i32>} : memref<8x1xf32, #tpu.memory_space<vmem>>, vector<8x1xf32>,
    %c0_21 = arith.constant 0 : index
    %c0_22 = arith.constant 0 : index
    %35 = vector.load %arg8[%c0_21, %c0_22] : memref<8x1xf32, #tpu.memory_space<vmem>>, vector<8x1xf32>
    tpu.vector_store %arg8[%c0_21, %c0_22], %22 {strides = array<i32>} : memref<8x1xf32, #tpu.memory_space<vmem>>, vector<8x1xf32>,
    return
  }
  func.func @transform_0(%arg0: i32) -> (i32, i32) {
    %c0_i32 = arith.constant 0 : i32
    %c0_i32_0 = arith.constant 0 : i32
    return %arg0, %c0_i32 : i32, i32
  }
  func.func @transform_1(%arg0: i32) -> (i32, i32) {
    %c0_i32 = arith.constant 0 : i32
    %c0_i32_0 = arith.constant 0 : i32
    return %arg0, %c0_i32 : i32, i32
  }
  func.func @transform_2(%arg0: i32) -> (i32, i32) {
    %c0_i32 = arith.constant 0 : i32
    %c0_i32_0 = arith.constant 0 : i32
    %c0_i32_1 = arith.constant 0 : i32
    return %c0_i32, %c0_i32_0 : i32, i32
  }
  func.func @transform_3(%arg0: i32) -> (i32, i32) {
    %c0_i32 = arith.constant 0 : i32
    %c0_i32_0 = arith.constant 0 : i32
    %c0_i32_1 = arith.constant 0 : i32
    return %c0_i32, %c0_i32_0 : i32, i32
  }
  func.func @transform_4(%arg0: i32) -> (i32, i32) {
    %c0_i32 = arith.constant 0 : i32
    %c0_i32_0 = arith.constant 0 : i32
    %c0_i32_1 = arith.constant 0 : i32
    return %c0_i32, %c0_i32_0 : i32, i32
  }
  func.func @transform_5(%arg0: i32) -> (i32, i32) {
    %c0_i32 = arith.constant 0 : i32
    %c0_i32_0 = arith.constant 0 : i32
    %c0_i32_1 = arith.constant 0 : i32
    return %c0_i32, %c0_i32_0 : i32, i32
  }
  func.func @transform_6(%arg0: i32) -> (i32, i32) {
    %c0_i32 = arith.constant 0 : i32
    %c0_i32_0 = arith.constant 0 : i32
    return %arg0, %c0_i32 : i32, i32
  }
  func.func @transform_7(%arg0: i32) -> (i32, i32) {
    %c0_i32 = arith.constant 0 : i32
    %c0_i32_0 = arith.constant 0 : i32
    return %arg0, %c0_i32 : i32, i32
  }
}

</mosaic_0001>

<llo_original>
// kernel: tpu_custom_call.1
$region0: #{tpu_custom_call.1}
  #allocation0 [shape = 'u32[]', space=smem, size = 0x4, offset = 0x4, fixed_abs, tag = 'smem constant byte address 0x4 - core index']
  #allocation1 [shape = 'u32[144,128]{1,0:T(1,128)}', space=vmem, size = 0x12000, scoped, tag = 'internal scratch']
  %s0 = inlined_call_operand.vmem [shape: f32[8,16], index: 0, kind: input, shape index: {}]
  %s1 = inlined_call_operand.vmem [shape: f32[8,4], index: 1, kind: input, shape index: {}]
  %s2 = inlined_call_operand.vmem [shape: f32[16,128], index: 2, kind: input, shape index: {}]
  %s3 = inlined_call_operand.vmem [shape: f32[128,64], index: 3, kind: input, shape index: {}]
  %s4 = inlined_call_operand.vmem [shape: f32[64,5], index: 4, kind: input, shape index: {}]
  %s5 = inlined_call_operand.vmem [shape: f32[8,128], index: 5, kind: input, shape index: {}]
  %s6 = inlined_call_operand.vmem [shape: f32[8,1], index: 6, kind: output, shape index: {0}]
  %s7 = inlined_call_operand.vmem [shape: f32[8,1], index: 7, kind: output, shape index: {1}]
  %8 = xla_tuple %s6, %s7
  %s9 = sld [smem:[#allocation0]]
  $region42: #{tpu_custom_call.1} parent=0
    _
  %s11 = ssub.s32 1, %s9
  %s12 = scalar_select 0, %s11, %s9
  // Predicated region
  $region2: #{tpu_custom_call.1} parent=0 // pred_check
    _
  $region3: #{tpu_custom_call.1} parent=0 // pred_check_branch
    %14 = sbr.rel (0) target = $region5
  $region4: #{tpu_custom_call.1} parent=0 // pred_region
    _
  $region5: #{tpu_custom_call.1} parent=0 // pred_fallthru
    _
  // Predicated region
  $region6: #{tpu_custom_call.1} parent=0 // pred_check
    _
  $region7: #{tpu_custom_call.1} parent=0 // pred_check_branch
    %16 = sbr.rel (0) target = $region9
  $region8: #{tpu_custom_call.1} parent=0 // pred_region
    _
  $region9: #{tpu_custom_call.1} parent=0 // pred_fallthru
    _
  // Predicated region
  $region10: #{tpu_custom_call.1} parent=0 // pred_check
    _
  $region11: #{tpu_custom_call.1} parent=0 // pred_check_branch
    %18 = sbr.rel (0) target = $region13
  $region12: #{tpu_custom_call.1} parent=0 // pred_region
    _
  $region13: #{tpu_custom_call.1} parent=0 // pred_fallthru
    _
  // Predicated region
  $region14: #{tpu_custom_call.1} parent=0 // pred_check
    _
  $region15: #{tpu_custom_call.1} parent=0 // pred_check_branch
    %20 = sbr.rel (0) target = $region17
  $region16: #{tpu_custom_call.1} parent=0 // pred_region
    _
  $region17: #{tpu_custom_call.1} parent=0 // pred_fallthru
    _
  // Predicated region
  $region18: #{tpu_custom_call.1} parent=0 // pred_check
    _
  $region19: #{tpu_custom_call.1} parent=0 // pred_check_branch
    %22 = sbr.rel (0) target = $region21
  $region20: #{tpu_custom_call.1} parent=0 // pred_region
    _
  $region21: #{tpu_custom_call.1} parent=0 // pred_fallthru
    _
  // Predicated region
  $region22: #{tpu_custom_call.1} parent=0 // pred_check
    _
  $region23: #{tpu_custom_call.1} parent=0 // pred_check_branch
    %24 = sbr.rel (0) target = $region25
  $region24: #{tpu_custom_call.1} parent=0 // pred_region
    _
  $region25: #{tpu_custom_call.1} parent=0 // pred_fallthru
    _
  %v25 = vld [vmem:[%s5] sm:$0x1]
  %v26 = vld [vmem:[%s5 + $0x1] sm:$0x1]
  %v27 = vld [vmem:[%s5 + $0x2] sm:$0x1]
  %v28 = vld [vmem:[%s5 + $0x3] sm:$0x1]
  %v29 = vld [vmem:[%s5 + $0x4] sm:$0x1]
  %v30 = vld [vmem:[%s0] sm:$0xff]
  %v31 = vld [vmem:[%s2] sm:$0xff]
  %v32 = vld [vmem:[%s2 + $0x8] sm:$0xff]
  %v33 = vlaneseq
  %v34 = vshrl.u32 %v33, 7
  %v35 = vsub.s32 0, %v34
  %v36 = vrot.slane %v25, %v35
  %vm37 = vcmask 130048
  %v39 = vsel %vm37, %v30, 0
  %41 = vmatprep.subr.mxu0 0.0
  %42 = vmatpush1.msra.mxu0 %v31
  %43 = vmatprep.subr.mxu0 0.0
  %44 = vmatpush1.msra.mxu0 %v32
  %45 = vmatprep.subr.mxu0 0.0
  %46 = vmatpush1.msra.mxu0 0.0
  %47 = vmatprep.subr.mxu0 0.0
  %48 = vmatpush1.msra.mxu0 0.0
  %49 = vmatprep.subr.mxu0 0.0
  %50 = vmatpush1.msra.mxu0 0.0
  %51 = vmatprep.subr.mxu0 0.0
  %52 = vmatpush1.msra.mxu0 0.0
  %53 = vmatprep.subr.mxu0 0.0
  %54 = vmatpush1.msra.mxu0 0.0
  %55 = vmatprep.subr.mxu0 0.0
  %56 = vmatpush1.msra.mxu0 0.0
  %57 = vmatprep.subr.mxu0 0.0
  %58 = vmatpush1.msra.mxu0 0.0
  %59 = vmatprep.subr.mxu0 0.0
  %60 = vmatpush1.msra.mxu0 0.0
  %61 = vmatprep.subr.mxu0 0.0
  %62 = vmatpush1.msra.mxu0 0.0
  %63 = vmatprep.subr.mxu0 0.0
  %64 = vmatpush1.msra.mxu0 0.0
  %65 = vmatprep.subr.mxu0 0.0
  %66 = vmatpush1.msra.mxu0 0.0
  %67 = vmatprep.subr.mxu0 0.0
  %68 = vmatpush1.msra.mxu0 0.0
  %69 = vmatprep.subr.mxu0 0.0
  %70 = vmatpush1.msra.mxu0 0.0
  %71 = vmatprep.subr.mxu0 0.0
  %72 = vmatpush1.msra.mxu0 0.0
  %73 = vmatprep.subr.mxu0 0.0
  %74 = vmatpush1.msra.mxu0 0.0
  %75 = vmatprep.subr.mxu0 0.0
  %76 = vmatpush1.msra.mxu0 0.0
  %77 = vmatprep.subr.mxu0 0.0
  %78 = vmatpush1.msra.mxu0 0.0
  %79 = vmatprep.subr.mxu0 0.0
  %80 = vmatpush1.msra.mxu0 0.0
  %81 = vmatprep.subr.mxu0 0.0
  %82 = vmatpush1.msra.mxu0 0.0
  %83 = vmatprep.subr.mxu0 0.0
  %84 = vmatpush1.msra.mxu0 0.0
  %85 = vmatprep.subr.mxu0 0.0
  %86 = vmatpush1.msra.mxu0 0.0
  %87 = vmatprep.subr.mxu0 0.0
  %88 = vmatpush1.msra.mxu0 0.0
  %89 = vmatprep.subr.mxu0 0.0
  %90 = vmatpush1.msra.mxu0 0.0
  %91 = vmatprep.subr.mxu0 0.0
  %92 = vmatpush1.msra.mxu0 0.0
  %93 = vmatprep.subr.mxu0 0.0
  %94 = vmatpush1.msra.mxu0 0.0
  %95 = vmatprep.subr.mxu0 0.0
  %96 = vmatpush1.msra.mxu0 0.0
  %97 = vmatprep.subr.mxu0 0.0
  %98 = vmatpush1.msra.mxu0 0.0
  %99 = vmatprep.subr.mxu0 0.0
  %100 = vmatpush1.msra.mxu0 0.0
  %101 = vmatprep.subr.mxu0 0.0
  %102 = vmatpush1.msra.mxu0 0.0
  %103 = vmatprep.subr.mxu0 0.0
  %104 = vmatpush1.msra.mxu0 0.0
  %105 = vmatprep.mubr.f32.mxu0 0.0
  %106 = vmatmul.mubr.f32.gmra.mrb[0].mxu0 %v39
  %v107 = vpop.f32.mrb[0].mxu0
  %v108 = vadd.f32 %v36, %v107
  %v109 = vpop.f32.mrb[0].mxu0
  %110 = vdwg.mxu0
  %v111 = vtanh.pop %v108
  %v112 = vld [vmem:[%s3] sm:$0xff]
  %v113 = vld [vmem:[%s3 + $0x8] sm:$0xff]
  %v114 = vld [vmem:[%s3 + $0x10] sm:$0xff]
  %v115 = vld [vmem:[%s3 + $0x18] sm:$0xff]
  %v116 = vld [vmem:[%s3 + $0x20] sm:$0xff]
  %v117 = vld [vmem:[%s3 + $0x28] sm:$0xff]
  %v118 = vld [vmem:[%s3 + $0x30] sm:$0xff]
  %v119 = vld [vmem:[%s3 + $0x38] sm:$0xff]
  %v120 = vld [vmem:[%s3 + $0x40] sm:$0xff]
  %v121 = vld [vmem:[%s3 + $0x48] sm:$0xff]
  %v122 = vld [vmem:[%s3 + $0x50] sm:$0xff]
  %v123 = vld [vmem:[%s3 + $0x58] sm:$0xff]
  %v124 = vld [vmem:[%s3 + $0x60] sm:$0xff]
  %v125 = vld [vmem:[%s3 + $0x68] sm:$0xff]
  %v126 = vld [vmem:[%s3 + $0x70] sm:$0xff]
  %v127 = vld [vmem:[%s3 + $0x78] sm:$0xff]
  %v128 = vlaneseq
  %v129 = vshrl.u32 %v128, 7
  %v130 = vsub.s32 0, %v129
  %v131 = vrot.slane %v26, %v130
  %132 = vmatprep.subr.mxu0 0.0
  %133 = vmatpush1.msra.mxu0 %v112
  %134 = vmatprep.subr.mxu0 0.0
  %135 = vmatpush1.msra.mxu0 %v113
  %136 = vmatprep.subr.mxu0 0.0
  %137 = vmatpush1.msra.mxu0 %v114
  %138 = vmatprep.subr.mxu0 0.0
  %139 = vmatpush1.msra.mxu0 %v115
  %140 = vmatprep.subr.mxu0 0.0
  %141 = vmatpush1.msra.mxu0 %v116
  %142 = vmatprep.subr.mxu0 0.0
  %143 = vmatpush1.msra.mxu0 %v117
  %144 = vmatprep.subr.mxu0 0.0
  %145 = vmatpush1.msra.mxu0 %v118
  %146 = vmatprep.subr.mxu0 0.0
  %147 = vmatpush1.msra.mxu0 %v119
  %148 = vmatprep.subr.mxu0 0.0
  %149 = vmatpush1.msra.mxu0 %v120
  %150 = vmatprep.subr.mxu0 0.0
  %151 = vmatpush1.msra.mxu0 %v121
  %152 = vmatprep.subr.mxu0 0.0
  %153 = vmatpush1.msra.mxu0 %v122
  %154 = vmatprep.subr.mxu0 0.0
  %155 = vmatpush1.msra.mxu0 %v123
  %156 = vmatprep.subr.mxu0 0.0
  %157 = vmatpush1.msra.mxu0 %v124
  %158 = vmatprep.subr.mxu0 0.0
  %159 = vmatpush1.msra.mxu0 %v125
  %160 = vmatprep.subr.mxu0 0.0
  %161 = vmatpush1.msra.mxu0 %v126
  %162 = vmatprep.subr.mxu0 0.0
  %163 = vmatpush1.msra.mxu0 %v127
  %164 = vmatprep.subr.mxu0 0.0
  %165 = vmatpush1.msra.mxu0 0.0
  %166 = vmatprep.subr.mxu0 0.0
  %167 = vmatpush1.msra.mxu0 0.0
  %168 = vmatprep.subr.mxu0 0.0
  %169 = vmatpush1.msra.mxu0 0.0
  %170 = vmatprep.subr.mxu0 0.0
  %171 = vmatpush1.msra.mxu0 0.0
  %172 = vmatprep.subr.mxu0 0.0
  %173 = vmatpush1.msra.mxu0 0.0
  %174 = vmatprep.subr.mxu0 0.0
  %175 = vmatpush1.msra.mxu0 0.0
  %176 = vmatprep.subr.mxu0 0.0
  %177 = vmatpush1.msra.mxu0 0.0
  %178 = vmatprep.subr.mxu0 0.0
  %179 = vmatpush1.msra.mxu0 0.0
  %180 = vmatprep.subr.mxu0 0.0
  %181 = vmatpush1.msra.mxu0 0.0
  %182 = vmatprep.subr.mxu0 0.0
  %183 = vmatpush1.msra.mxu0 0.0
  %184 = vmatprep.subr.mxu0 0.0
  %185 = vmatpush1.msra.mxu0 0.0
  %186 = vmatprep.subr.mxu0 0.0
  %187 = vmatpush1.msra.mxu0 0.0
  %188 = vmatprep.subr.mxu0 0.0
  %189 = vmatpush1.msra.mxu0 0.0
  %190 = vmatprep.subr.mxu0 0.0
  %191 = vmatpush1.msra.mxu0 0.0
  %192 = vmatprep.subr.mxu0 0.0
  %193 = vmatpush1.msra.mxu0 0.0
  %194 = vmatprep.subr.mxu0 0.0
  %195 = vmatpush1.msra.mxu0 0.0
  %196 = vmatprep.mubr.f32.mxu0 0.0
  %197 = vmatmul.mubr.f32.gmra.mrb[0].mxu0 %v111
  %v198 = vpop.f32.mrb[0].mxu0
  %v199 = vadd.f32 %v131, %v198
  %v200 = vpop.f32.mrb[0].mxu0
  %201 = vdwg.mxu0
  %v202 = vtanh.pop %v199
  %v203 = vld [vmem:[%s4] sm:$0xff]
  %v204 = vld [vmem:[%s4 + $0x8] sm:$0xff]
  %v205 = vld [vmem:[%s4 + $0x10] sm:$0xff]
  %v206 = vld [vmem:[%s4 + $0x18] sm:$0xff]
  %v207 = vld [vmem:[%s4 + $0x20] sm:$0xff]
  %v208 = vld [vmem:[%s4 + $0x28] sm:$0xff]
  %v209 = vld [vmem:[%s4 + $0x30] sm:$0xff]
  %v210 = vld [vmem:[%s4 + $0x38] sm:$0xff]
  %v211 = vlaneseq
  %v212 = vshrl.u32 %v211, 7
  %v213 = vsub.s32 0, %v212
  %v214 = vrot.slane %v27, %v213
  %vm215 = vcmask 523264
  %v217 = vsel %vm215, %v202, 0
  %219 = vmatprep.subr.mxu0 0.0
  %220 = vmatpush1.msra.mxu0 %v203
  %221 = vmatprep.subr.mxu0 0.0
  %222 = vmatpush1.msra.mxu0 %v204
  %223 = vmatprep.subr.mxu0 0.0
  %224 = vmatpush1.msra.mxu0 %v205
  %225 = vmatprep.subr.mxu0 0.0
  %226 = vmatpush1.msra.mxu0 %v206
  %227 = vmatprep.subr.mxu0 0.0
  %228 = vmatpush1.msra.mxu0 %v207
  %229 = vmatprep.subr.mxu0 0.0
  %230 = vmatpush1.msra.mxu0 %v208
  %231 = vmatprep.subr.mxu0 0.0
  %232 = vmatpush1.msra.mxu0 %v209
  %233 = vmatprep.subr.mxu0 0.0
  %234 = vmatpush1.msra.mxu0 %v210
  %235 = vmatprep.subr.mxu0 0.0
  %236 = vmatpush1.msra.mxu0 0.0
  %237 = vmatprep.subr.mxu0 0.0
  %238 = vmatpush1.msra.mxu0 0.0
  %239 = vmatprep.subr.mxu0 0.0
  %240 = vmatpush1.msra.mxu0 0.0
  %241 = vmatprep.subr.mxu0 0.0
  %242 = vmatpush1.msra.mxu0 0.0
  %243 = vmatprep.subr.mxu0 0.0
  %244 = vmatpush1.msra.mxu0 0.0
  %245 = vmatprep.subr.mxu0 0.0
  %246 = vmatpush1.msra.mxu0 0.0
  %247 = vmatprep.subr.mxu0 0.0
  %248 = vmatpush1.msra.mxu0 0.0
  %249 = vmatprep.subr.mxu0 0.0
  %250 = vmatpush1.msra.mxu0 0.0
  %251 = vmatprep.subr.mxu0 0.0
  %252 = vmatpush1.msra.mxu0 0.0
  %253 = vmatprep.subr.mxu0 0.0
  %254 = vmatpush1.msra.mxu0 0.0
  %255 = vmatprep.subr.mxu0 0.0
  %256 = vmatpush1.msra.mxu0 0.0
  %257 = vmatprep.subr.mxu0 0.0
  %258 = vmatpush1.msra.mxu0 0.0
  %259 = vmatprep.subr.mxu0 0.0
  %260 = vmatpush1.msra.mxu0 0.0
  %261 = vmatprep.subr.mxu0 0.0
  %262 = vmatpush1.msra.mxu0 0.0
  %263 = vmatprep.subr.mxu0 0.0
  %264 = vmatpush1.msra.mxu0 0.0
  %265 = vmatprep.subr.mxu0 0.0
  %266 = vmatpush1.msra.mxu0 0.0
  %267 = vmatprep.subr.mxu0 0.0
  %268 = vmatpush1.msra.mxu0 0.0
  %269 = vmatprep.subr.mxu0 0.0
  %270 = vmatpush1.msra.mxu0 0.0
  %271 = vmatprep.subr.mxu0 0.0
  %272 = vmatpush1.msra.mxu0 0.0
  %273 = vmatprep.subr.mxu0 0.0
  %274 = vmatpush1.msra.mxu0 0.0
  %275 = vmatprep.subr.mxu0 0.0
  %276 = vmatpush1.msra.mxu0 0.0
  %277 = vmatprep.subr.mxu0 0.0
  %278 = vmatpush1.msra.mxu0 0.0
  %279 = vmatprep.subr.mxu0 0.0
  %280 = vmatpush1.msra.mxu0 0.0
  %281 = vmatprep.subr.mxu0 0.0
  %282 = vmatpush1.msra.mxu0 0.0
  %283 = vmatprep.mubr.f32.mxu0 0.0
  %284 = vmatmul.mubr.f32.gmra.mrb[0].mxu0 %v217
  %v285 = vpop.f32.mrb[0].mxu0
  %v286 = vadd.f32 %v214, %v285
  %v287 = vpop.f32.mrb[0].mxu0
  %288 = vdwg.mxu0
  %v289 = vtanh.pop %v286
  %v290 = vld [vmem:[%s1] sm:$0xff]
  %v291 = vsub.f32 %v290, %v289
  %v292 = vmul.f32 %v291, %v291
  %v293 = vlaneseq
  %v294 = vshrl.u32 %v293, 7
  %v295 = vsub.s32 0, %v294
  %v296 = vrot.slane %v28, %v295
  %v297 = vmul.f32 %v292, %v296
  %vm298 = vcmask 31744
  %v299 = vsel %vm298, %v297, 0.0
  %300 = vadd.xlane.f32.xlu0 %v299
  %v301 = vpop.xlane.xlu0 %300
  %v302 = vmul.f32 %v301, 0.5
  %v303 = vlaneseq
  %v304 = vshrl.u32 %v303, 7
  %v305 = vsub.s32 0, %v304
  %v306 = vrot.slane %v29, %v305
  %v307 = vsub.f32 %v306, %v302
  %vm308 = vcmask 7168
  %309 = vst.msk [vmem:[%s6] sm:$0xff] %vm308, %v307
  %311 = vrot.lane.b32.xlu0 %v286, 124
  %v312 = vpop.permute.xlu0 %311
  %314 = vst.msk [vmem:[%s7] sm:$0xff] %vm308, %v312
  // Predicated region
  $region26: #{tpu_custom_call.1} parent=0 // pred_check
    _
  $region27: #{tpu_custom_call.1} parent=0 // pred_check_branch
    %316 = sbr.rel (0) target = $region29
  $region28: #{tpu_custom_call.1} parent=0 // pred_region
    _
  $region29: #{tpu_custom_call.1} parent=0 // pred_fallthru
    _
  // Predicated region
  $region30: #{tpu_custom_call.1} parent=0 // pred_check
    _
  $region31: #{tpu_custom_call.1} parent=0 // pred_check_branch
    %318 = sbr.rel (0) target = $region33
  $region32: #{tpu_custom_call.1} parent=0 // pred_region
    _
  $region33: #{tpu_custom_call.1} parent=0 // pred_fallthru
    _
  // Predicated region
  $region34: #{tpu_custom_call.1} parent=0 // pred_check
    _
  $region35: #{tpu_custom_call.1} parent=0 // pred_check_branch
    %320 = sbr.rel (0) target = $region37
  $region36: #{tpu_custom_call.1} parent=0 // pred_region
    _
  $region37: #{tpu_custom_call.1} parent=0 // pred_fallthru
    _
  // Predicated region
  $region38: #{tpu_custom_call.1} parent=0 // pred_check
    _
  $region39: #{tpu_custom_call.1} parent=0 // pred_check_branch
    %322 = sbr.rel (0) target = $region41
  $region40: #{tpu_custom_call.1} parent=0 // pred_region
    _
  $region41: #{tpu_custom_call.1} parent=0 // pred_fallthru
    _

</llo_original>
